<compile_context>
chip_gen: v6e
topology: v6e:2x2x1
jax: 0.10.0
libtpu: 0.0.40
codegen_flags: <defaults>
</compile_context>

<pallas_src>
import jax
import jax.numpy as jnp
from jax.experimental import pallas as pl
from jax.experimental.pallas import tpu as pltpu

TOKEN_ATTEND_SELF_VALUE = -0.0005
_NORM_EPS = 1e-12                        # F.normalize default eps
_MASK_KEEP = 1.0                         # positive sentinel in the replace map
_STEP_VMEM_BUDGET = 20 * 1024 * 1024     # target per-grid-step footprint
_VMEM_LIMIT_CAP = 48 * 1024 * 1024       # below physical VMEM on v5e/v6e/v7x


def _make_kernel(need_mask: bool, dim: int, mm_dtype, approx_reciprocal: bool):
    scale = dim ** (-0.5)

    def kernel(*refs):
        if need_mask:
            x_ref, repl_ref, o_ref = refs
        else:
            x_ref, o_ref = refs

        x = x_ref[...]                                   # (Bt, Lt, n, d)
        bt, lt, n, d = x.shape
        xg = x.reshape(bt * lt, n, d)                    # leading-dim collapse: free

        # ||x||^2 with f32 stats (no normalized-k tensor materialized; the
        # astype is a no-op for f32 inputs).
        xf = xg.astype(jnp.float32)
        norm_sq = jnp.sum(xf * xf, axis=-1)              # (g, n) f32
        inv_norm = jax.lax.rsqrt(jnp.maximum(norm_sq, _NORM_EPS * _NORM_EPS))
        # Fold d**-0.5 into the per-key scale: sim = (x_i . x_j) * scale * inv_norm_j
        post_scale = (inv_norm * jnp.float32(scale))[:, None, :]   # (g, 1, n)

        # Raw scores: identical operand for LHS/RHS, lane-dim contraction,
        # leading batch dim -> no relayouts, f32 accumulation on the MXU.
        xm = xg.astype(mm_dtype)
        sim = jax.lax.dot_general(
            xm, xm,
            dimension_numbers=(((2,), (2,)), ((0,), (0,))),
            preferred_element_type=jnp.float32)          # (g, n, n)
        sim = sim * post_scale

        if need_mask:
            # Single fused select: repl carries the replacement values
            # (-0.0005 self, -f32.max non-local) and a positive "keep" sentinel.
            repl = repl_ref[...]                         # (n, n) f32
            sim = jnp.where((repl <= 0.0)[None], repl[None], sim)

        # Softmax over j (lane dim); stats in f32.  -f32.max entries survive
        # `sim - max` without overflow because the row max is always a
        # normal-magnitude score (the diagonal is never set to -f32.max).
        sim = sim - jnp.max(sim, axis=-1, keepdims=True)
        p = jnp.exp(sim)
        denom = jnp.sum(p, axis=-1, keepdims=True)       # (g, n, 1)
        if approx_reciprocal:
            attn = p * pl.reciprocal(denom, approx=True)  # EUP vrcp
        else:
            attn = p / denom

        # out[g, i, d] = sum_j attn[g, i, j] * x[g, j, d]
        out = jax.lax.dot_general(
            attn.astype(mm_dtype), xm,
            dimension_numbers=(((2,), (1,)), ((0,), (0,))),
            preferred_element_type=jnp.float32)          # (g, n, d)

        # Lane-dense, sublane-dense store; no transpose needed in this layout.
        o_ref[...] = out.reshape(bt, lt, n, d).astype(o_ref.dtype)

    return kernel


def _build_replace_map(n: int, num_patches_side: int, attend_self: bool,
                       local_consensus_radius: int) -> jnp.ndarray:
    """(n, n) f32 map: replacement value where masked, positive sentinel to keep."""
    repl = jnp.full((n, n), jnp.float32(_MASK_KEEP), dtype=jnp.float32)
    if local_consensus_radius > 0:
        # matches torch: meshgrid(arange, arange) -> '(h w) c', cdist, dist > r
        hh, ww = jnp.meshgrid(jnp.arange(num_patches_side),
                              jnp.arange(num_patches_side), indexing="ij")
        coors = jnp.stack([hh, ww], axis=0).astype(jnp.float32).reshape(2, -1).T
        diff = coors[:, None, :] - coors[None, :, :]
        dist = jnp.sqrt(jnp.sum(diff * diff, axis=-1))
        repl = jnp.where(dist > local_consensus_radius,
                         -jnp.finfo(jnp.float32).max, repl)
    if not attend_self:
        # diagonal distance is 0, so it never collides with the non-local mask
        repl = jnp.where(jnp.eye(n, dtype=bool),
                         jnp.float32(TOKEN_ATTEND_SELF_VALUE), repl)
    return repl


def consensus_attention(levels: jnp.ndarray,
                        *,
                        num_patches_side: int,
                        attend_self: bool = True,
                        local_consensus_radius: int = 0,
                        mxu_bf16: bool = False,
                        approx_reciprocal: bool = True) -> jnp.ndarray:
    b, n, l, d = levels.shape
    need_mask = (local_consensus_radius > 0) or (not attend_self)
    mm_dtype = (jnp.bfloat16 if (mxu_bf16 and levels.dtype == jnp.float32)
                else levels.dtype)

    in_item = jnp.dtype(levels.dtype).itemsize
    mm_item = jnp.dtype(mm_dtype).itemsize

    # Per-grid-step VMEM footprint estimate (double-buffered I/O blocks,
    # ~3 live (g, n, n) f32 score tensors, f32 matmul result, small temps).
    def step_bytes(bt, lt):
        io = 2 * (2 * bt * lt * n * d * in_item)
        xm_extra = bt * lt * n * d * mm_item if mm_dtype != levels.dtype else 0
        scores = 3 * bt * lt * n * n * 4
        attn_mm = bt * lt * n * n * mm_item
        acc = bt * lt * n * d * 4
        small = 8 * bt * lt * n * 4 + 2 * n * n * 4
        return io + xm_extra + scores + attn_mm + acc + small

    # Batch tile: largest divisor of b that fits the per-step budget.
    bt = 1
    for cand in range(1, b + 1):
        if b % cand == 0 and step_bytes(cand, l) <= _STEP_VMEM_BUDGET:
            bt = cand
    nb = b // bt

    # If only one batch tile, split levels so v7x's two TensorCores both get
    # a 'parallel' unit of work.
    if nb == 1 and l >= 2 and l % 2 == 0:
        lt = l // 2
    else:
        lt = l
    nl = l // lt

    vmem_limit = int(min(max(2 * step_bytes(bt, lt) + (8 << 20), 32 << 20),
                         _VMEM_LIMIT_CAP))

    kernel = _make_kernel(need_mask, d, mm_dtype, approx_reciprocal)

    # One cheap lane-preserving relayout in the wrapper buys dense (n, d)
    # tiles and leading batch dims inside the kernel (no hidden relayouts).
    x_t = jnp.transpose(levels, (0, 2, 1, 3))            # (b, l, n, d)

    in_specs = [pl.BlockSpec((bt, lt, n, d), lambda bi, li: (bi, li, 0, 0))]
    inputs = [x_t]
    if need_mask:
        repl = _build_replace_map(n, num_patches_side, attend_self,
                                  local_consensus_radius)
        in_specs.append(pl.BlockSpec((n, n), lambda bi, li: (0, 0)))
        inputs.append(repl)

    out_t = pl.pallas_call(
        kernel,
        out_shape=jax.ShapeDtypeStruct((b, l, n, d), levels.dtype),
        grid=(nb, nl),
        in_specs=in_specs,
        out_specs=pl.BlockSpec((bt, lt, n, d), lambda bi, li: (bi, li, 0, 0)),
        compiler_params=pltpu.CompilerParams(
            dimension_semantics=("parallel", "parallel"),
            vmem_limit_bytes=vmem_limit),
    )(*inputs)

    return jnp.transpose(out_t, (0, 2, 1, 3))            # back to (b, n, l, d)


# ----------------------------------------------------------------------------
# Pure-JAX reference (mirrors the PyTorch module) for correctness checking.
# ----------------------------------------------------------------------------
def _reference(levels, attend_self, local_consensus_radius, num_patches_side):
    b, n, l, d = levels.shape
    q = levels
    norm = jnp.sqrt(jnp.sum(levels * levels, axis=-1, keepdims=True))
    k = levels / jnp.maximum(norm, _NORM_EPS)
    sim = jnp.einsum("bild,bjld->blij", q, k) * d ** (-0.5)
    if not attend_self:
        eye = jnp.eye(n, dtype=bool)[None, None]
        sim = jnp.where(eye, TOKEN_ATTEND_SELF_VALUE, sim)
    if local_consensus_radius > 0:
        hh, ww = jnp.meshgrid(jnp.arange(num_patches_side),
                              jnp.arange(num_patches_side), indexing="ij")
        coors = jnp.stack([hh, ww], axis=0).astype(jnp.float32).reshape(2, -1).T
        diff = coors[:, None, :] - coors[None, :, :]
        dist = jnp.sqrt(jnp.sum(diff * diff, axis=-1))
        m = dist > local_consensus_radius
        sim = jnp.where(m[None, None], -jnp.finfo(sim.dtype).max, sim)
    attn = jax.nn.softmax(sim, axis=-1)
    return jnp.einsum("blij,bjld->bild", attn, levels)


if __name__ == "__main__":
    key = jax.random.PRNGKey(0)
    batch = 2
    num_patches_side = 4
    n = num_patches_side * num_patches_side     # 16 patches
    num_levels = 4
    dim = 128                                   # multiple of 128 -> lane-dense tiles

    levels = jax.random.normal(key, (batch, n, num_levels, dim), dtype=jnp.float32)

    # Tolerance note: the EUP approximate reciprocal in the softmax denominator
    # introduces ~1e-3-level relative error in the attention weights.
    tol = dict(rtol=5e-3, atol=5e-3)

    # Path 1: default (attend_self=True, no local mask) -- no mask input at all.
    out1 = jax.block_until_ready(
        consensus_attention(levels, num_patches_side=num_patches_side))
    ref1 = _reference(levels, True, 0, num_patches_side)
    assert out1.shape == (batch, n, num_levels, dim)
    assert jnp.allclose(out1, ref1, **tol), "mismatch vs reference (default path)"

    # Path 2: self-mask + local-consensus mask (exercises the fused replace map).
    out2 = jax.block_until_ready(
        consensus_attention(levels, num_patches_side=num_patches_side,
                            attend_self=False, local_consensus_radius=1))
    ref2 = _reference(levels, False, 1, num_patches_side)
    assert jnp.allclose(out2, ref2, **tol), "mismatch vs reference (masked path)"

    print("KERNEL_OK")
</pallas_src>

<mosaic_0001>
module attributes {stable_mosaic.version = 11 : i64} {
  func.func @kernel(%arg0: i32, %arg1: i32, %arg2: memref<2x2x16x128xf32, #tpu.memory_space<vmem>>, %arg3: memref<2x2x16x128xf32, #tpu.memory_space<vmem>>) attributes {dimension_semantics = [#tpu.dimension_semantics<parallel>, #tpu.dimension_semantics<parallel>], iteration_bounds = array<i64: 1, 2>, scalar_prefetch = 0 : i64, scratch_operands = 0 : i64, tpu.core_type = #tpu.core_type<tc>, window_params = [{transform_indices = @transform_0, window_bounds = array<i64: 2, 2, 16, 128>}, {transform_indices = @transform_1, window_bounds = array<i64: 2, 2, 16, 128>}]} {
    %c0 = arith.constant 0 : index
    %c0_0 = arith.constant 0 : index
    %c0_1 = arith.constant 0 : index
    %c0_2 = arith.constant 0 : index
    %0 = vector.load %arg2[%c0, %c0_0, %c0_1, %c0_2] : memref<2x2x16x128xf32, #tpu.memory_space<vmem>>, vector<2x2x16x128xf32>
    %1 = vector.shape_cast %0 : vector<2x2x16x128xf32> to vector<4x16x128xf32>
    %2 = arith.mulf %1, %1 : vector<4x16x128xf32>
    %cst = arith.constant dense<0.000000e+00> : vector<4x16xf32>
    %3 = vector.multi_reduction <add>, %2, %cst [2] : vector<4x16x128xf32> to vector<4x16xf32>
    %cst_3 = arith.constant 1.000000e-24 : f32
    %4 = vector.broadcast %cst_3 : f32 to vector<4x16xf32>
    %5 = arith.maximumf %3, %4 : vector<4x16xf32>
    %6 = math.rsqrt %5 : vector<4x16xf32>
    %cst_4 = arith.constant 0.0883883461 : f32
    %7 = vector.broadcast %cst_4 : f32 to vector<4x16xf32>
    %8 = arith.mulf %6, %7 : vector<4x16xf32>
    %9 = vector.shape_cast %8 : vector<4x16xf32> to vector<4x1x16xf32>
    %cst_5 = arith.constant dense<0.000000e+00> : vector<4x16x16xf32>
    %10 = tpu.matmul %1, %1, %cst_5 {dimension_numbers = #tpu.dot_dimension_numbers<[2], [2], [1], [1], [0, 0, 0, 1, 1, 1], [0], [0]>} : vector<4x16x128xf32>, vector<4x16x128xf32>, vector<4x16x16xf32> -> vector<4x16x16xf32>
    %11 = vector.broadcast %9 : vector<4x1x16xf32> to vector<4x16x16xf32>
    %12 = arith.mulf %10, %11 : vector<4x16x16xf32>
    %cst_6 = arith.constant dense<0xFF800000> : vector<4x16xf32>
    %13 = vector.multi_reduction <maximumf>, %12, %cst_6 [2] : vector<4x16x16xf32> to vector<4x16xf32>
    %14 = vector.shape_cast %13 : vector<4x16xf32> to vector<4x16x1xf32>
    %15 = vector.broadcast %14 : vector<4x16x1xf32> to vector<4x16x16xf32>
    %16 = arith.subf %12, %15 : vector<4x16x16xf32>
    %17 = math.exp %16 : vector<4x16x16xf32>
    %cst_7 = arith.constant dense<0.000000e+00> : vector<4x16xf32>
    %18 = vector.multi_reduction <add>, %17, %cst_7 [2] : vector<4x16x16xf32> to vector<4x16xf32>
    %19 = vector.shape_cast %18 : vector<4x16xf32> to vector<4x16x1xf32>
    %20 = tpu.reciprocal %19 {approx = true} : vector<4x16x1xf32> -> vector<4x16x1xf32>
    %21 = vector.broadcast %20 : vector<4x16x1xf32> to vector<4x16x16xf32>
    %22 = arith.mulf %17, %21 : vector<4x16x16xf32>
    %cst_8 = arith.constant dense<0.000000e+00> : vector<4x16x128xf32>
    %23 = tpu.matmul %22, %1, %cst_8 {dimension_numbers = #tpu.dot_dimension_numbers<[2], [1], [1], [2], [0, 0, 0, 1, 1, 2], [0], [0]>} : vector<4x16x16xf32>, vector<4x16x128xf32>, vector<4x16x128xf32> -> vector<4x16x128xf32>
    %24 = vector.shape_cast %23 : vector<4x16x128xf32> to vector<2x2x16x128xf32>
    %c0_9 = arith.constant 0 : index
    %c0_10 = arith.constant 0 : index
    %c0_11 = arith.constant 0 : index
    %c0_12 = arith.constant 0 : index
    %25 = vector.load %arg3[%c0_9, %c0_10, %c0_11, %c0_12] : memref<2x2x16x128xf32, #tpu.memory_space<vmem>>, vector<2x2x16x128xf32>
    tpu.vector_store %arg3[%c0_9, %c0_10, %c0_11, %c0_12], %24 {strides = array<i32>} : memref<2x2x16x128xf32, #tpu.memory_space<vmem>>, vector<2x2x16x128xf32>,
    return
  }
  func.func @transform_0(%arg0: i32, %arg1: i32) -> (i32, i32, i32, i32) {
    %c0_i32 = arith.constant 0 : i32
    %c0_i32_0 = arith.constant 0 : i32
    %c0_i32_1 = arith.constant 0 : i32
    return %arg0, %arg1, %c0_i32, %c0_i32_0 : i32, i32, i32, i32
  }
  func.func @transform_1(%arg0: i32, %arg1: i32) -> (i32, i32, i32, i32) {
    %c0_i32 = arith.constant 0 : i32
    %c0_i32_0 = arith.constant 0 : i32
    %c0_i32_1 = arith.constant 0 : i32
    return %arg0, %arg1, %c0_i32, %c0_i32_0 : i32, i32, i32, i32
  }
}

</mosaic_0001>

<llo_original>
// kernel: tpu_custom_call.1
$region0: #{tpu_custom_call.1}
  #allocation0 [shape = 'u32[]', space=smem, size = 0x4, offset = 0x4, fixed_abs, tag = 'smem constant byte address 0x4 - core index']
  #allocation1 [shape = 'u32[144,128]{1,0:T(1,128)}', space=vmem, size = 0x12000, scoped, tag = 'internal scratch']
  #allocation6 [shape = 's32[]', space=sflag, size = 0x4, offset = 0, fixed_abs, tag = 'sflag constant byte address 0x0 - dummy sync flag']
  #allocation8 [shape = 's32[]', space=sflag, size = 0x4, offset = 0, fixed_abs, tag = 'sflag constant byte address 0x0 - dummy sync flag']
  %s0 = inlined_call_operand.hbm [shape: f32[2,4,16,128], index: 0, kind: input, shape index: {}]
  %s1 = inlined_call_operand.hbm [shape: f32[2,4,16,128], index: 1, kind: output, shape index: {}]
  %s2 = sld [smem:[#allocation0]]
  $region41: #{tpu_custom_call.1} parent=0
    _
  %s4 = ssub.s32 1, %s2
  %s5 = scalar_select 0, %s4, %s2
  $region1: #{tpu_custom_call.1} parent=0
    #allocation2 [shape = 'u8[65536]{0}', space=vmem, size = 0x10000, scoped, tag = 'input window, operand 0']
    #allocation3 [shape = 's32[2]{0}', space=sflag, size = 0x8, scoped, tag = 'scoped memory for tpu_custom_call.1']
    #allocation4 [shape = 's32[2]{0}', space=sflag, size = 0x8, scoped, tag = 'scoped memory for tpu_custom_call.1']
    #allocation5 [shape = 'u8[65536]{0}', space=vmem, size = 0x10000, scoped, tag = 'output window, operand 0']
    %6 = vsyncpa [#allocation3], 0
    %s7 = scalar_lea.sflag [#allocation3], 1
    %8 = vsyncpa %s7, 0
    %9 = vsyncpa [#allocation4], 0
    %s10 = scalar_lea.sflag [#allocation4], 1
    %11 = vsyncpa %s10, 0
    loop: start=0, step=1, limit=4
    $region2: #{tpu_custom_call.1} parent=1 // loop_pre_header
      _
    $region3: #{tpu_custom_call.1} parent=1 // loop_header
      %s13 = sphi 0, %s17
      %p14 = scmp.ge.s32.totalorder %s13, 4
      %s20 = sphi 0, %s32
      %s21 = sphi 0, %s28
      %s22 = sphi 0, %s20
      %s23 = sphi 0, %s21
      %s24 = sphi 0, %s22
      %s25 = sphi 0, %s23
      %s37 = sphi 0, %s39
      %s40 = sphi 0, %s37
      %s41 = sphi 0, %s40
      %s57 = sphi 0, %s41
      %s65 = sphi 0, %s67
      %s68 = sphi 0, %s65
      %s69 = sphi 0, %s68
      %s85 = sphi 0, %s69
    $region4: #{tpu_custom_call.1} parent=1 // loop_header_branch
      %16 = sbr.rel (%p14) target = $region8
    $region5: #{tpu_custom_call.1} parent=1 // loop_body
      %s18 = ssub.s32 %s13, 1
      %s19 = ssub.s32 %s13, 2
      %s26 = sadd.s32 1, %s21
      %p27 = scmp.ge.s32.totalorder %s26, 2
      %s28 = scalar_select %p27, 0, %s26
      %s29 = sadd.s32 1, %s20
      %s30 = scalar_select %p27, %s29, %s20
      %p31 = scmp.ge.s32.totalorder %s30, 1
      %s32 = scalar_select %p31, 0, %s30
      %s33 = ssub.s32 %s20, %s32
      %s34 = ssub.s32 %s21, %s28
      %s35 = sor.u32 %s33, %s34
      %p36 = scmp.eq.s32.totalorder %s35, 0
      %s38 = sadd.s32 %s37, 1
      %s39 = scalar_select %p36, %s37, %s38
      %p42 = pneg %p36
      %p43 = scmp.eq.s32.totalorder %s13, 1
      %p44 = por %p42, %p43
      %p45 = scmp.ne.s32.totalorder %s37, %s40
      %p46 = scmp.eq.s32.totalorder %s13, 0
      %p47 = por %p45, %p46
      %p48 = scmp.ne.s32.totalorder %s37, %s40
      %p49 = scmp.eq.s32.totalorder %s18, 1
      %p50 = por %p48, %p49
      %p51 = scmp.ne.s32.totalorder %s40, %s41
      %p52 = scmp.eq.s32.totalorder %s18, 0
      %p53 = por %p51, %p52
      %p54 = scmp.ne.s32.totalorder %s40, %s41
      %p55 = scmp.eq.s32.totalorder %s19, 1
      %p56 = por %p54, %p55
      %p58 = scmp.ne.s32.totalorder %s41, %s57
      %p59 = scmp.eq.s32.totalorder %s19, 0
      %p60 = por %p58, %p59
      %s61 = ssub.s32 %s20, %s32
      %s62 = ssub.s32 %s21, %s28
      %s63 = sor.u32 %s61, %s62
      %p64 = scmp.eq.s32.totalorder %s63, 0
      %s66 = sadd.s32 %s65, 1
      %s67 = scalar_select %p64, %s65, %s66
      %p70 = pneg %p64
      %p71 = scmp.eq.s32.totalorder %s13, 1
      %p72 = por %p70, %p71
      %p73 = scmp.ne.s32.totalorder %s65, %s68
      %p74 = scmp.eq.s32.totalorder %s13, 0
      %p75 = por %p73, %p74
      %p76 = scmp.ne.s32.totalorder %s65, %s68
      %p77 = scmp.eq.s32.totalorder %s18, 1
      %p78 = por %p76, %p77
      %p79 = scmp.ne.s32.totalorder %s68, %s69
      %p80 = scmp.eq.s32.totalorder %s18, 0
      %p81 = por %p79, %p80
      %p82 = scmp.ne.s32.totalorder %s68, %s69
      %p83 = scmp.eq.s32.totalorder %s19, 1
      %p84 = por %p82, %p83
      %p86 = scmp.ne.s32.totalorder %s69, %s85
      %p87 = scmp.eq.s32.totalorder %s19, 0
      %p88 = por %p86, %p87
      %p89 = scmp.le.s32.totalorder 1, %s13
      %p90 = scmp.lt.s32.totalorder %s13, 3
      %p91 = pnand %p89, %p90
      %p92 = pneg %p91
      // Predicated region
      $region9: #{tpu_custom_call.1} parent=5 // pred_check
        _
      $region10: #{tpu_custom_call.1} parent=5 // pred_check_branch
        %94 = sbr.rel (%p91) target = $region12
      $region11: #{tpu_custom_call.1} parent=5 // pred_region
        %s95 = ssub.s32 %s13, 1
      $region12: #{tpu_custom_call.1} parent=5 // pred_fallthru
        _
      %p96 = scmp.lt.s32.totalorder %s13, 2
      // Predicated region
      $region13: #{tpu_custom_call.1} parent=5 // pred_check
        %p97 = pneg %p96
      $region14: #{tpu_custom_call.1} parent=5 // pred_check_branch
        %99 = sbr.rel (%p97) target = $region16
      $region15: #{tpu_custom_call.1} parent=5 // pred_region
        // Predicated region
        $region17: #{tpu_custom_call.1} parent=15 // pred_check
          %p100 = pneg %p47
        $region18: #{tpu_custom_call.1} parent=15 // pred_check_branch
          %102 = sbr.rel (%p100) target = $region20
        $region19: #{tpu_custom_call.1} parent=15 // pred_region
          #allocation7 [shape = 'u32[6]{0}', space=smem, size = 0x18, scoped, tag = 'DMA stride descriptor']
          %s103 = sand.u32 %s37, 1
          %s104 = scalar_lea.sflag [#allocation3], %s103
          %s105 = sand.u32 %s37, 1
          %s106 = smul.addr %s105, 64
          %s107 = scalar_lea.vmem [#allocation2], %s106
          %s108 = smul.u32 2, %s20
          %s109 = smul.u32 2, %s21
          %s111 = ssub.s32 1024, 1024
          %112 = vsyncadd %s104, %s111
          %s113 = smul.addr %s109, 2
          %s114 = smul.addr %s108, 8
          %s115 = sadd.s32 %s113, %s114
          %s116 = smul.addr %s115, 128
          %s117 = scalar_lea.hbm %s0, %s116
          %s119 = sshll.u32 1, 14
          %s120 = sxor.u32 4294967295, %s119
          %s122 = sld [smem:[#allocation0]]
          %s123 = sadd.s32 2, %s122
          %s125 = sshll.u32 7, 26
          %s126 = sxor.u32 4294967295, %s125
          %s127 = sand.u32 0, %s126
          %s128 = sshll.u32 %s123, 26
          %s129 = sor.u32 %s127, %s128
          %s130 = sshll.u32 %s107, 4
          %s131 = int_to_ptr.vmem [resolvable:$true] %s130
          %137 = sst [smem:[#allocation7]] 1024
          %s138 = scalar_lea.smem [#allocation7], 1
          %139 = sst [smem:[%s138]] 512
          %s140 = scalar_lea.smem [#allocation7], 2
          %141 = sst [smem:[%s140]] 4
          %s142 = scalar_lea.smem [#allocation7], 3
          %143 = sst [smem:[%s142]] 128
          %s144 = scalar_lea.smem [#allocation7], 4
          %145 = sst [smem:[%s144]] 128
          %s146 = scalar_lea.smem [#allocation7], 5
          %147 = sst [smem:[%s146]] 8
          %149 = dma.general %s117, 1024, %s131, %s104, 131072, [#allocation7], %s129, 0
        $region20: #{tpu_custom_call.1} parent=15 // pred_fallthru
          _
      $region16: #{tpu_custom_call.1} parent=5 // pred_fallthru
        _
      %p150 = scmp.le.s32.totalorder 1, %s13
      %p151 = scmp.lt.s32.totalorder %s13, 3
      %p152 = pnand %p150, %p151
      %p153 = pneg %p152
      // Predicated region
      $region21: #{tpu_custom_call.1} parent=5 // pred_check
        _
      $region22: #{tpu_custom_call.1} parent=5 // pred_check_branch
        %155 = sbr.rel (%p152) target = $region24
      $region23: #{tpu_custom_call.1} parent=5 // pred_region
        %s156 = ssub.s32 %s13, 1
        %s157 = sand.u32 %s40, 1
        %s158 = scalar_lea.sflag [#allocation3], %s157
        %s159 = sand.u32 %s40, 1
        %s160 = smul.addr %s159, 64
        %s161 = scalar_lea.vmem [#allocation2], %s160
        // Predicated region
        $region25: #{tpu_custom_call.1} parent=23 // pred_check
          %p162 = pneg %p53
        $region26: #{tpu_custom_call.1} parent=23 // pred_check_branch
          %164 = sbr.rel (%p162) target = $region28
        $region27: #{tpu_custom_call.1} parent=23 // pred_region
          %165 = dma.done %s158, 1024
        $region28: #{tpu_custom_call.1} parent=23 // pred_fallthru
          _
        %s166 = sand.u32 %s40, 1
        %s167 = scalar_lea.sflag [#allocation3], %s166
        %s168 = sand.u32 %s40, 1
        %s169 = smul.addr %s168, 64
        %s170 = scalar_lea.vmem [#allocation2], %s169
        %p171 = pneg %p53
        %p172 = pneg %p50
        %p173 = pneg %p81
        %p174 = pneg %p78
        %s175 = sand.u32 %s68, 1
        %s176 = scalar_lea.sflag [#allocation4], %s175
        %s177 = sand.u32 %s68, 1
        %s178 = smul.addr %s177, 64
        %s179 = scalar_lea.vmem [#allocation5], %s178
        %s180 = smul.u32 2, %s22
        %s181 = smul.u32 2, %s23
        %s182 = smul.u32 2, %s22
        %s183 = smul.u32 2, %s23
        %v184 = vld [vmem:[%s161] sm:$0xff]
        %v185 = vld [vmem:[%s161 + $0x8] sm:$0xff]
        %v186 = vld [vmem:[%s161 + $0x10] sm:$0xff]
        %v187 = vld [vmem:[%s161 + $0x18] sm:$0xff]
        %v188 = vld [vmem:[%s161 + $0x20] sm:$0xff]
        %v189 = vld [vmem:[%s161 + $0x28] sm:$0xff]
        %v190 = vld [vmem:[%s161 + $0x30] sm:$0xff]
        %v191 = vld [vmem:[%s161 + $0x38] sm:$0xff]
        %v192 = vmul.f32 %v184, %v184
        %v193 = vmul.f32 %v185, %v185
        %v194 = vmul.f32 %v186, %v186
        %v195 = vmul.f32 %v187, %v187
        %v196 = vmul.f32 %v188, %v188
        %v197 = vmul.f32 %v189, %v189
        %v198 = vmul.f32 %v190, %v190
        %v199 = vmul.f32 %v191, %v191
        %200 = vadd.xlane.f32.xlu0 %v192
        %v201 = vpop.xlane.xlu0 %200
        %202 = vadd.xlane.f32.xlu0 %v193
        %v203 = vpop.xlane.xlu0 %202
        %204 = vadd.xlane.f32.xlu0 %v194
        %v205 = vpop.xlane.xlu0 %204
        %206 = vadd.xlane.f32.xlu0 %v195
        %v207 = vpop.xlane.xlu0 %206
        %208 = vadd.xlane.f32.xlu0 %v196
        %v209 = vpop.xlane.xlu0 %208
        %210 = vadd.xlane.f32.xlu0 %v197
        %v211 = vpop.xlane.xlu0 %210
        %212 = vadd.xlane.f32.xlu0 %v198
        %v213 = vpop.xlane.xlu0 %212
        %214 = vadd.xlane.f32.xlu0 %v199
        %v215 = vpop.xlane.xlu0 %214
        %v216 = vmax.f32 %v201, 1e-24
        %v217 = vmax.f32 %v203, 1e-24
        %v218 = vmax.f32 %v205, 1e-24
        %v219 = vmax.f32 %v207, 1e-24
        %v220 = vmax.f32 %v209, 1e-24
        %v221 = vmax.f32 %v211, 1e-24
        %v222 = vmax.f32 %v213, 1e-24
        %v223 = vmax.f32 %v215, 1e-24
        %v224 = vrsqrt.pop %v216
        %v225 = vrsqrt.pop %v217
        %v226 = vrsqrt.pop %v218
        %v227 = vrsqrt.pop %v219
        %v228 = vrsqrt.pop %v220
        %v229 = vrsqrt.pop %v221
        %v230 = vrsqrt.pop %v222
        %v231 = vrsqrt.pop %v223
        %v232 = vmul.f32 %v224, 0.088388346
        %v233 = vmul.f32 %v225, 0.088388346
        %v234 = vmul.f32 %v226, 0.088388346
        %v235 = vmul.f32 %v227, 0.088388346
        %v236 = vmul.f32 %v228, 0.088388346
        %v237 = vmul.f32 %v229, 0.088388346
        %v238 = vmul.f32 %v230, 0.088388346
        %v239 = vmul.f32 %v231, 0.088388346
        %240 = vmatprep.subr.mxu0 0.0
        %241 = vmatpush1.xpose.msra.mxu0 0.0
        %242 = vmatprep.subr.mxu0 0.0
        %243 = vmatpush1.xpose.msra.mxu0 0.0
        %244 = vmatprep.subr.mxu0 0.0
        %245 = vmatpush1.xpose.msra.mxu0 0.0
        %246 = vmatprep.subr.mxu0 0.0
        %247 = vmatpush1.xpose.msra.mxu0 0.0
        %248 = vmatprep.subr.mxu0 0.0
        %249 = vmatpush1.xpose.msra.mxu0 0.0
        %250 = vmatprep.subr.mxu0 0.0
        %251 = vmatpush1.xpose.msra.mxu0 0.0
        %252 = vmatprep.subr.mxu0 0.0
        %253 = vmatpush1.xpose.msra.mxu0 0.0
        %254 = vmatprep.subr.mxu0 0.0
        %255 = vmatpush1.xpose.msra.mxu0 0.0
        %256 = vmatprep.subr.mxu0 0.0
        %257 = vmatpush1.xpose.msra.mxu0 0.0
        %258 = vmatprep.subr.mxu0 0.0
        %259 = vmatpush1.xpose.msra.mxu0 0.0
        %260 = vmatprep.subr.mxu0 0.0
        %261 = vmatpush1.xpose.msra.mxu0 0.0
        %262 = vmatprep.subr.mxu0 0.0
        %263 = vmatpush1.xpose.msra.mxu0 0.0
        %264 = vmatprep.subr.mxu0 0.0
        %265 = vmatpush1.xpose.msra.mxu0 0.0
        %266 = vmatprep.subr.mxu0 0.0
        %267 = vmatpush1.xpose.msra.mxu0 0.0
        %268 = vmatprep.subr.mxu0 0.0
        %269 = vmatpush1.xpose.msra.mxu0 %v185
        %270 = vmatprep.subr.mxu0 0.0
        %271 = vmatpush1.xpose.msra.mxu0 %v184
        %272 = vmatprep.subr.mxu0 0.0
        %273 = vmatpush2.xpose.msra.mxu0 0.0
        %274 = vmatprep.subr.mxu0 0.0
        %275 = vmatpush2.xpose.msra.mxu0 0.0
        %276 = vmatprep.subr.mxu0 0.0
        %277 = vmatpush2.xpose.msra.mxu0 0.0
        %278 = vmatprep.subr.mxu0 0.0
        %279 = vmatpush2.xpose.msra.mxu0 0.0
        %280 = vmatprep.subr.mxu0 0.0
        %281 = vmatpush2.xpose.msra.mxu0 0.0
        %282 = vmatprep.subr.mxu0 0.0
        %283 = vmatpush2.xpose.msra.mxu0 0.0
        %284 = vmatprep.subr.mxu0 0.0
        %285 = vmatpush2.xpose.msra.mxu0 0.0
        %286 = vmatprep.subr.mxu0 0.0
        %287 = vmatpush2.xpose.msra.mxu0 0.0
        %288 = vmatprep.subr.mxu0 0.0
        %289 = vmatpush2.xpose.msra.mxu0 0.0
        %290 = vmatprep.subr.mxu0 0.0
        %291 = vmatpush2.xpose.msra.mxu0 0.0
        %292 = vmatprep.subr.mxu0 0.0
        %293 = vmatpush2.xpose.msra.mxu0 0.0
        %294 = vmatprep.subr.mxu0 0.0
        %295 = vmatpush2.xpose.msra.mxu0 0.0
        %296 = vmatprep.subr.mxu0 0.0
        %297 = vmatpush2.xpose.msra.mxu0 0.0
        %298 = vmatprep.subr.mxu0 0.0
        %299 = vmatpush2.xpose.msra.mxu0 0.0
        %300 = vmatprep.subr.mxu0 0.0
        %301 = vmatpush2.xpose.msra.mxu0 0.0
        %302 = vmatprep.subr.mxu0 0.0
        %303 = vmatpush2.xpose.msra.mxu0 0.0
        %304 = vmatprep.mubr.f32.mxu0 0.0
        %305 = vmatmul.mubr.f32.gmra.mxu0 %v184
        %v306 = vpop.f32.mrf.mxu0
        %v307 = vadd.f32 0.0, %v306
        %v308 = vpop.f32.mrf.mxu0
        %309 = vmatprep.mubr.f32.mxu0 0.0
        %310 = vmatmul.mubr.f32.gmra.mxu0 %v185
        %v311 = vpop.f32.mrf.mxu0
        %v312 = vadd.f32 0.0, %v311
        %v313 = vpop.f32.mrf.mxu0
        %314 = vdwg.mxu0
        %315 = vmatprep.subr.mxu0 0.0
        %316 = vmatpush1.xpose.msra.mxu0 0.0
        %317 = vmatprep.subr.mxu0 0.0
        %318 = vmatpush1.xpose.msra.mxu0 0.0
        %319 = vmatprep.subr.mxu0 0.0
        %320 = vmatpush1.xpose.msra.mxu0 0.0
        %321 = vmatprep.subr.mxu0 0.0
        %322 = vmatpush1.xpose.msra.mxu0 0.0
        %323 = vmatprep.subr.mxu0 0.0
        %324 = vmatpush1.xpose.msra.mxu0 0.0
        %325 = vmatprep.subr.mxu0 0.0
        %326 = vmatpush1.xpose.msra.mxu0 0.0
        %327 = vmatprep.subr.mxu0 0.0
        %328 = vmatpush1.xpose.msra.mxu0 0.0
        %329 = vmatprep.subr.mxu0 0.0
        %330 = vmatpush1.xpose.msra.mxu0 0.0
        %331 = vmatprep.subr.mxu0 0.0
        %332 = vmatpush1.xpose.msra.mxu0 0.0
        %333 = vmatprep.subr.mxu0 0.0
        %334 = vmatpush1.xpose.msra.mxu0 0.0
        %335 = vmatprep.subr.mxu0 0.0
        %336 = vmatpush1.xpose.msra.mxu0 0.0
        %337 = vmatprep.subr.mxu0 0.0
        %338 = vmatpush1.xpose.msra.mxu0 0.0
        %339 = vmatprep.subr.mxu0 0.0
        %340 = vmatpush1.xpose.msra.mxu0 0.0
        %341 = vmatprep.subr.mxu0 0.0
        %342 = vmatpush1.xpose.msra.mxu0 0.0
        %343 = vmatprep.subr.mxu0 0.0
        %344 = vmatpush1.xpose.msra.mxu0 %v187
        %345 = vmatprep.subr.mxu0 0.0
        %346 = vmatpush1.xpose.msra.mxu0 %v186
        %347 = vmatprep.subr.mxu0 0.0
        %348 = vmatpush2.xpose.msra.mxu0 0.0
        %349 = vmatprep.subr.mxu0 0.0
        %350 = vmatpush2.xpose.msra.mxu0 0.0
        %351 = vmatprep.subr.mxu0 0.0
        %352 = vmatpush2.xpose.msra.mxu0 0.0
        %353 = vmatprep.subr.mxu0 0.0
        %354 = vmatpush2.xpose.msra.mxu0 0.0
        %355 = vmatprep.subr.mxu0 0.0
        %356 = vmatpush2.xpose.msra.mxu0 0.0
        %357 = vmatprep.subr.mxu0 0.0
        %358 = vmatpush2.xpose.msra.mxu0 0.0
        %359 = vmatprep.subr.mxu0 0.0
        %360 = vmatpush2.xpose.msra.mxu0 0.0
        %361 = vmatprep.subr.mxu0 0.0
        %362 = vmatpush2.xpose.msra.mxu0 0.0
        %363 = vmatprep.subr.mxu0 0.0
        %364 = vmatpush2.xpose.msra.mxu0 0.0
        %365 = vmatprep.subr.mxu0 0.0
        %366 = vmatpush2.xpose.msra.mxu0 0.0
        %367 = vmatprep.subr.mxu0 0.0
        %368 = vmatpush2.xpose.msra.mxu0 0.0
        %369 = vmatprep.subr.mxu0 0.0
        %370 = vmatpush2.xpose.msra.mxu0 0.0
        %371 = vmatprep.subr.mxu0 0.0
        %372 = vmatpush2.xpose.msra.mxu0 0.0
        %373 = vmatprep.subr.mxu0 0.0
        %374 = vmatpush2.xpose.msra.mxu0 0.0
        %375 = vmatprep.subr.mxu0 0.0
        %376 = vmatpush2.xpose.msra.mxu0 0.0
        %377 = vmatprep.subr.mxu0 0.0
        %378 = vmatpush2.xpose.msra.mxu0 0.0
        %379 = vmatprep.mubr.f32.mxu0 0.0
        %380 = vmatmul.mubr.f32.gmra.mxu0 %v186
        %v381 = vpop.f32.mrf.mxu0
        %v382 = vadd.f32 0.0, %v381
        %v383 = vpop.f32.mrf.mxu0
        %384 = vmatprep.mubr.f32.mxu0 0.0
        %385 = vmatmul.mubr.f32.gmra.mxu0 %v187
        %v386 = vpop.f32.mrf.mxu0
        %v387 = vadd.f32 0.0, %v386
        %v388 = vpop.f32.mrf.mxu0
        %389 = vdwg.mxu0
        %390 = vmatprep.subr.mxu0 0.0
        %391 = vmatpush1.xpose.msra.mxu0 0.0
        %392 = vmatprep.subr.mxu0 0.0
        %393 = vmatpush1.xpose.msra.mxu0 0.0
        %394 = vmatprep.subr.mxu0 0.0
        %395 = vmatpush1.xpose.msra.mxu0 0.0
        %396 = vmatprep.subr.mxu0 0.0
        %397 = vmatpush1.xpose.msra.mxu0 0.0
        %398 = vmatprep.subr.mxu0 0.0
        %399 = vmatpush1.xpose.msra.mxu0 0.0
        %400 = vmatprep.subr.mxu0 0.0
        %401 = vmatpush1.xpose.msra.mxu0 0.0
        %402 = vmatprep.subr.mxu0 0.0
        %403 = vmatpush1.xpose.msra.mxu0 0.0
        %404 = vmatprep.subr.mxu0 0.0
        %405 = vmatpush1.xpose.msra.mxu0 0.0
        %406 = vmatprep.subr.mxu0 0.0
        %407 = vmatpush1.xpose.msra.mxu0 0.0
        %408 = vmatprep.subr.mxu0 0.0
        %409 = vmatpush1.xpose.msra.mxu0 0.0
        %410 = vmatprep.subr.mxu0 0.0
        %411 = vmatpush1.xpose.msra.mxu0 0.0
        %412 = vmatprep.subr.mxu0 0.0
        %413 = vmatpush1.xpose.msra.mxu0 0.0
        %414 = vmatprep.subr.mxu0 0.0
        %415 = vmatpush1.xpose.msra.mxu0 0.0
        %416 = vmatprep.subr.mxu0 0.0
        %417 = vmatpush1.xpose.msra.mxu0 0.0
        %418 = vmatprep.subr.mxu0 0.0
        %419 = vmatpush1.xpose.msra.mxu0 %v189
        %420 = vmatprep.subr.mxu0 0.0
        %421 = vmatpush1.xpose.msra.mxu0 %v188
        %422 = vmatprep.subr.mxu0 0.0
        %423 = vmatpush2.xpose.msra.mxu0 0.0
        %424 = vmatprep.subr.mxu0 0.0
        %425 = vmatpush2.xpose.msra.mxu0 0.0
        %426 = vmatprep.subr.mxu0 0.0
        %427 = vmatpush2.xpose.msra.mxu0 0.0
        %428 = vmatprep.subr.mxu0 0.0
        %429 = vmatpush2.xpose.msra.mxu0 0.0
        %430 = vmatprep.subr.mxu0 0.0
        %431 = vmatpush2.xpose.msra.mxu0 0.0
        %432 = vmatprep.subr.mxu0 0.0
        %433 = vmatpush2.xpose.msra.mxu0 0.0
        %434 = vmatprep.subr.mxu0 0.0
        %435 = vmatpush2.xpose.msra.mxu0 0.0
        %436 = vmatprep.subr.mxu0 0.0
        %437 = vmatpush2.xpose.msra.mxu0 0.0
        %438 = vmatprep.subr.mxu0 0.0
        %439 = vmatpush2.xpose.msra.mxu0 0.0
        %440 = vmatprep.subr.mxu0 0.0
        %441 = vmatpush2.xpose.msra.mxu0 0.0
        %442 = vmatprep.subr.mxu0 0.0
        %443 = vmatpush2.xpose.msra.mxu0 0.0
        %444 = vmatprep.subr.mxu0 0.0
        %445 = vmatpush2.xpose.msra.mxu0 0.0
        %446 = vmatprep.subr.mxu0 0.0
        %447 = vmatpush2.xpose.msra.mxu0 0.0
        %448 = vmatprep.subr.mxu0 0.0
        %449 = vmatpush2.xpose.msra.mxu0 0.0
        %450 = vmatprep.subr.mxu0 0.0
        %451 = vmatpush2.xpose.msra.mxu0 0.0
        %452 = vmatprep.subr.mxu0 0.0
        %453 = vmatpush2.xpose.msra.mxu0 0.0
        %454 = vmatprep.mubr.f32.mxu0 0.0
        %455 = vmatmul.mubr.f32.gmra.mxu0 %v188
        %v456 = vpop.f32.mrf.mxu0
        %v457 = vadd.f32 0.0, %v456
        %v458 = vpop.f32.mrf.mxu0
        %459 = vmatprep.mubr.f32.mxu0 0.0
        %460 = vmatmul.mubr.f32.gmra.mxu0 %v189
        %v461 = vpop.f32.mrf.mxu0
        %v462 = vadd.f32 0.0, %v461
        %v463 = vpop.f32.mrf.mxu0
        %464 = vdwg.mxu0
        %465 = vmatprep.subr.mxu0 0.0
        %466 = vmatpush1.xpose.msra.mxu0 0.0
        %467 = vmatprep.subr.mxu0 0.0
        %468 = vmatpush1.xpose.msra.mxu0 0.0
        %469 = vmatprep.subr.mxu0 0.0
        %470 = vmatpush1.xpose.msra.mxu0 0.0
        %471 = vmatprep.subr.mxu0 0.0
        %472 = vmatpush1.xpose.msra.mxu0 0.0
        %473 = vmatprep.subr.mxu0 0.0
        %474 = vmatpush1.xpose.msra.mxu0 0.0
        %475 = vmatprep.subr.mxu0 0.0
        %476 = vmatpush1.xpose.msra.mxu0 0.0
        %477 = vmatprep.subr.mxu0 0.0
        %478 = vmatpush1.xpose.msra.mxu0 0.0
        %479 = vmatprep.subr.mxu0 0.0
        %480 = vmatpush1.xpose.msra.mxu0 0.0
        %481 = vmatprep.subr.mxu0 0.0
        %482 = vmatpush1.xpose.msra.mxu0 0.0
        %483 = vmatprep.subr.mxu0 0.0
        %484 = vmatpush1.xpose.msra.mxu0 0.0
        %485 = vmatprep.subr.mxu0 0.0
        %486 = vmatpush1.xpose.msra.mxu0 0.0
        %487 = vmatprep.subr.mxu0 0.0
        %488 = vmatpush1.xpose.msra.mxu0 0.0
        %489 = vmatprep.subr.mxu0 0.0
        %490 = vmatpush1.xpose.msra.mxu0 0.0
        %491 = vmatprep.subr.mxu0 0.0
        %492 = vmatpush1.xpose.msra.mxu0 0.0
        %493 = vmatprep.subr.mxu0 0.0
        %494 = vmatpush1.xpose.msra.mxu0 %v191
        %495 = vmatprep.subr.mxu0 0.0
        %496 = vmatpush1.xpose.msra.mxu0 %v190
        %497 = vmatprep.subr.mxu0 0.0
        %498 = vmatpush2.xpose.msra.mxu0 0.0
        %499 = vmatprep.subr.mxu0 0.0
        %500 = vmatpush2.xpose.msra.mxu0 0.0
        %501 = vmatprep.subr.mxu0 0.0
        %502 = vmatpush2.xpose.msra.mxu0 0.0
        %503 = vmatprep.subr.mxu0 0.0
        %504 = vmatpush2.xpose.msra.mxu0 0.0
        %505 = vmatprep.subr.mxu0 0.0
        %506 = vmatpush2.xpose.msra.mxu0 0.0
        %507 = vmatprep.subr.mxu0 0.0
        %508 = vmatpush2.xpose.msra.mxu0 0.0
        %509 = vmatprep.subr.mxu0 0.0
        %510 = vmatpush2.xpose.msra.mxu0 0.0
        %511 = vmatprep.subr.mxu0 0.0
        %512 = vmatpush2.xpose.msra.mxu0 0.0
        %513 = vmatprep.subr.mxu0 0.0
        %514 = vmatpush2.xpose.msra.mxu0 0.0
        %515 = vmatprep.subr.mxu0 0.0
        %516 = vmatpush2.xpose.msra.mxu0 0.0
        %517 = vmatprep.subr.mxu0 0.0
        %518 = vmatpush2.xpose.msra.mxu0 0.0
        %519 = vmatprep.subr.mxu0 0.0
        %520 = vmatpush2.xpose.msra.mxu0 0.0
        %521 = vmatprep.subr.mxu0 0.0
        %522 = vmatpush2.xpose.msra.mxu0 0.0
        %523 = vmatprep.subr.mxu0 0.0
        %524 = vmatpush2.xpose.msra.mxu0 0.0
        %525 = vmatprep.subr.mxu0 0.0
        %526 = vmatpush2.xpose.msra.mxu0 0.0
        %527 = vmatprep.subr.mxu0 0.0
        %528 = vmatpush2.xpose.msra.mxu0 0.0
        %529 = vmatprep.mubr.f32.mxu0 0.0
        %530 = vmatmul.mubr.f32.gmra.mxu0 %v190
        %v531 = vpop.f32.mrf.mxu0
        %v532 = vadd.f32 0.0, %v531
        %v533 = vpop.f32.mrf.mxu0
        %534 = vmatprep.mubr.f32.mxu0 0.0
        %535 = vmatmul.mubr.f32.gmra.mxu0 %v191
        %v536 = vpop.f32.mrf.mxu0
        %v537 = vadd.f32 0.0, %v536
        %v538 = vpop.f32.mrf.mxu0
        %539 = vdwg.mxu0
        %v548 = vlaneseq
        %v549 = vand.u32 %v548, 127
        %v550 = vlaneseq
        %v551 = vshrl.u32 %v550, 7
        %v552 = vsub.s32 %v549, %v551
        %v553 = vrot.slane %v232, %v552
        %v554 = vadd.s32 %v549, 4294967288
        %v555 = vlaneseq
        %v556 = vshrl.u32 %v555, 7
        %v557 = vsub.s32 %v554, %v556
        %v558 = vrot.slane %v233, %v557
        %vm559 = vcmask 130112
        %v560 = vsel %vm559, %v558, %v553
        %v561 = vlaneseq
        %v562 = vshrl.u32 %v561, 7
        %v563 = vsub.s32 %v549, %v562
        %v564 = vrot.slane %v234, %v563
        %v565 = vlaneseq
        %v566 = vshrl.u32 %v565, 7
        %v567 = vsub.s32 %v554, %v566
        %v568 = vrot.slane %v235, %v567
        %v569 = vsel %vm559, %v568, %v564
        %v570 = vlaneseq
        %v571 = vshrl.u32 %v570, 7
        %v572 = vsub.s32 %v549, %v571
        %v573 = vrot.slane %v236, %v572
        %v574 = vlaneseq
        %v575 = vshrl.u32 %v574, 7
        %v576 = vsub.s32 %v554, %v575
        %v577 = vrot.slane %v237, %v576
        %v578 = vsel %vm559, %v577, %v573
        %v579 = vlaneseq
        %v580 = vshrl.u32 %v579, 7
        %v581 = vsub.s32 %v549, %v580
        %v582 = vrot.slane %v238, %v581
        %v583 = vlaneseq
        %v584 = vshrl.u32 %v583, 7
        %v585 = vsub.s32 %v554, %v584
        %v586 = vrot.slane %v239, %v585
        %v587 = vsel %vm559, %v586, %v582
        %vm588 = vcmask 1042434
        %v589 = vsel %vm588, %v560, %v560
        %vm590 = vcmask 1043459
        %v591 = vsel %vm590, %v560, %v589
        %vm592 = vcmask 1044484
        %v593 = vsel %vm592, %v560, %v591
        %vm594 = vcmask 1045509
        %v595 = vsel %vm594, %v560, %v593
        %vm596 = vcmask 1046534
        %v597 = vsel %vm596, %v560, %v595
        %vm598 = vcmask 1047559
        %v599 = vsel %vm598, %v560, %v597
        %v600 = vsel %vm588, %v569, %v569
        %v601 = vsel %vm590, %v569, %v600
        %v602 = vsel %vm592, %v569, %v601
        %v603 = vsel %vm594, %v569, %v602
        %v604 = vsel %vm596, %v569, %v603
        %v605 = vsel %vm598, %v569, %v604
        %v606 = vsel %vm588, %v578, %v578
        %v607 = vsel %vm590, %v578, %v606
        %v608 = vsel %vm592, %v578, %v607
        %v609 = vsel %vm594, %v578, %v608
        %v610 = vsel %vm596, %v578, %v609
        %v611 = vsel %vm598, %v578, %v610
        %v612 = vsel %vm588, %v587, %v587
        %v613 = vsel %vm590, %v587, %v612
        %v614 = vsel %vm592, %v587, %v613
        %v615 = vsel %vm594, %v587, %v614
        %v616 = vsel %vm596, %v587, %v615
        %v617 = vsel %vm598, %v587, %v616
        %v622 = vmul.f32 %v307, %v599
        %v623 = vmul.f32 %v312, %v599
        %v624 = vmul.f32 %v382, %v605
        %v625 = vmul.f32 %v387, %v605
        %v626 = vmul.f32 %v457, %v611
        %v627 = vmul.f32 %v462, %v611
        %v628 = vmul.f32 %v532, %v617
        %v629 = vmul.f32 %v537, %v617
        %vm630 = vcmask 130048
        %v631 = vsel %vm630, %v622, -inf
        %632 = vmax.xlane.f32.xlu0 %v631
        %v633 = vpop.xlane.xlu0 %632
        %v634 = vsel %vm630, %v623, -inf
        %635 = vmax.xlane.f32.xlu0 %v634
        %v636 = vpop.xlane.xlu0 %635
        %v637 = vsel %vm630, %v624, -inf
        %638 = vmax.xlane.f32.xlu0 %v637
        %v639 = vpop.xlane.xlu0 %638
        %v640 = vsel %vm630, %v625, -inf
        %641 = vmax.xlane.f32.xlu0 %v640
        %v642 = vpop.xlane.xlu0 %641
        %v643 = vsel %vm630, %v626, -inf
        %644 = vmax.xlane.f32.xlu0 %v643
        %v645 = vpop.xlane.xlu0 %644
        %v646 = vsel %vm630, %v627, -inf
        %647 = vmax.xlane.f32.xlu0 %v646
        %v648 = vpop.xlane.xlu0 %647
        %v649 = vsel %vm630, %v628, -inf
        %650 = vmax.xlane.f32.xlu0 %v649
        %v651 = vpop.xlane.xlu0 %650
        %v652 = vsel %vm630, %v629, -inf
        %653 = vmax.xlane.f32.xlu0 %v652
        %v654 = vpop.xlane.xlu0 %653
        %v655 = vsub.f32 %v622, %v633
        %v656 = vsub.f32 %v623, %v636
        %v657 = vsub.f32 %v624, %v639
        %v658 = vsub.f32 %v625, %v642
        %v659 = vsub.f32 %v626, %v645
        %v660 = vsub.f32 %v627, %v648
        %v661 = vsub.f32 %v628, %v651
        %v662 = vsub.f32 %v629, %v654
        %v663 = vmul.f32 %v655, 1.442695
        %v664 = vpow.pop %v663
        %v665 = vmul.f32 %v656, 1.442695
        %v666 = vpow.pop %v665
        %v667 = vmul.f32 %v657, 1.442695
        %v668 = vpow.pop %v667
        %v669 = vmul.f32 %v658, 1.442695
        %v670 = vpow.pop %v669
        %v671 = vmul.f32 %v659, 1.442695
        %v672 = vpow.pop %v671
        %v673 = vmul.f32 %v660, 1.442695
        %v674 = vpow.pop %v673
        %v675 = vmul.f32 %v661, 1.442695
        %v676 = vpow.pop %v675
        %v677 = vmul.f32 %v662, 1.442695
        %v678 = vpow.pop %v677
        %v679 = vsel %vm630, %v664, 0.0
        %680 = vadd.xlane.f32.xlu0 %v679
        %v681 = vpop.xlane.xlu0 %680
        %v682 = vsel %vm630, %v666, 0.0
        %683 = vadd.xlane.f32.xlu0 %v682
        %v684 = vpop.xlane.xlu0 %683
        %v685 = vsel %vm630, %v668, 0.0
        %686 = vadd.xlane.f32.xlu0 %v685
        %v687 = vpop.xlane.xlu0 %686
        %v688 = vsel %vm630, %v670, 0.0
        %689 = vadd.xlane.f32.xlu0 %v688
        %v690 = vpop.xlane.xlu0 %689
        %v691 = vsel %vm630, %v672, 0.0
        %692 = vadd.xlane.f32.xlu0 %v691
        %v693 = vpop.xlane.xlu0 %692
        %v694 = vsel %vm630, %v674, 0.0
        %695 = vadd.xlane.f32.xlu0 %v694
        %v696 = vpop.xlane.xlu0 %695
        %v697 = vsel %vm630, %v676, 0.0
        %698 = vadd.xlane.f32.xlu0 %v697
        %v699 = vpop.xlane.xlu0 %698
        %v700 = vsel %vm630, %v678, 0.0
        %701 = vadd.xlane.f32.xlu0 %v700
        %v702 = vpop.xlane.xlu0 %701
        %v703 = vrcp.pop %v681
        %v704 = vrcp.pop %v684
        %v705 = vrcp.pop %v687
        %v706 = vrcp.pop %v690
        %v707 = vrcp.pop %v693
        %v708 = vrcp.pop %v696
        %v709 = vrcp.pop %v699
        %v710 = vrcp.pop %v702
        %v711 = vmul.f32 %v664, %v703
        %v712 = vmul.f32 %v666, %v704
        %v713 = vmul.f32 %v668, %v705
        %v714 = vmul.f32 %v670, %v706
        %v715 = vmul.f32 %v672, %v707
        %v716 = vmul.f32 %v674, %v708
        %v717 = vmul.f32 %v676, %v709
        %v718 = vmul.f32 %v678, %v710
        %v720 = vsel %vm630, %v711, 0
        %v723 = vsel %vm630, %v712, 0
        %725 = vmatprep.subr.mxu0 0.0
        %726 = vmatpush1.msra.mxu0 0.0
        %727 = vmatprep.subr.mxu0 0.0
        %728 = vmatpush1.msra.mxu0 0.0
        %729 = vmatprep.subr.mxu0 0.0
        %730 = vmatpush1.msra.mxu0 0.0
        %731 = vmatprep.subr.mxu0 0.0
        %732 = vmatpush1.msra.mxu0 0.0
        %733 = vmatprep.subr.mxu0 0.0
        %734 = vmatpush1.msra.mxu0 0.0
        %735 = vmatprep.subr.mxu0 0.0
        %736 = vmatpush1.msra.mxu0 0.0
        %737 = vmatprep.subr.mxu0 0.0
        %738 = vmatpush1.msra.mxu0 0.0
        %739 = vmatprep.subr.mxu0 0.0
        %740 = vmatpush1.msra.mxu0 0.0
        %741 = vmatprep.subr.mxu0 0.0
        %742 = vmatpush1.msra.mxu0 0.0
        %743 = vmatprep.subr.mxu0 0.0
        %744 = vmatpush1.msra.mxu0 0.0
        %745 = vmatprep.subr.mxu0 0.0
        %746 = vmatpush1.msra.mxu0 0.0
        %747 = vmatprep.subr.mxu0 0.0
        %748 = vmatpush1.msra.mxu0 0.0
        %749 = vmatprep.subr.mxu0 0.0
        %750 = vmatpush1.msra.mxu0 0.0
        %751 = vmatprep.subr.mxu0 0.0
        %752 = vmatpush1.msra.mxu0 0.0
        %753 = vmatprep.subr.mxu0 0.0
        %754 = vmatpush1.msra.mxu0 %v185
        %755 = vmatprep.subr.mxu0 0.0
        %756 = vmatpush1.msra.mxu0 %v184
        %757 = vmatprep.subr.mxu0 0.0
        %758 = vmatpush2.msra.mxu0 0.0
        %759 = vmatprep.subr.mxu0 0.0
        %760 = vmatpush2.msra.mxu0 0.0
        %761 = vmatprep.subr.mxu0 0.0
        %762 = vmatpush2.msra.mxu0 0.0
        %763 = vmatprep.subr.mxu0 0.0
        %764 = vmatpush2.msra.mxu0 0.0
        %765 = vmatprep.subr.mxu0 0.0
        %766 = vmatpush2.msra.mxu0 0.0
        %767 = vmatprep.subr.mxu0 0.0
        %768 = vmatpush2.msra.mxu0 0.0
        %769 = vmatprep.subr.mxu0 0.0
        %770 = vmatpush2.msra.mxu0 0.0
        %771 = vmatprep.subr.mxu0 0.0
        %772 = vmatpush2.msra.mxu0 0.0
        %773 = vmatprep.subr.mxu0 0.0
        %774 = vmatpush2.msra.mxu0 0.0
        %775 = vmatprep.subr.mxu0 0.0
        %776 = vmatpush2.msra.mxu0 0.0
        %777 = vmatprep.subr.mxu0 0.0
        %778 = vmatpush2.msra.mxu0 0.0
        %779 = vmatprep.subr.mxu0 0.0
        %780 = vmatpush2.msra.mxu0 0.0
        %781 = vmatprep.subr.mxu0 0.0
        %782 = vmatpush2.msra.mxu0 0.0
        %783 = vmatprep.subr.mxu0 0.0
        %784 = vmatpush2.msra.mxu0 0.0
        %785 = vmatprep.subr.mxu0 0.0
        %786 = vmatpush2.msra.mxu0 0.0
        %787 = vmatprep.subr.mxu0 0.0
        %788 = vmatpush2.msra.mxu0 0.0
        %789 = vmatprep.mubr.f32.mxu0 0.0
        %790 = vmatmul.mubr.f32.gmra.mxu0 %v720
        %v791 = vpop.f32.mrf.mxu0
        %v792 = vadd.f32 0.0, %v791
        %v793 = vpop.f32.mrf.mxu0
        %794 = vmatprep.mubr.f32.mxu0 0.0
        %795 = vmatmul.mubr.f32.gmra.mxu0 %v723
        %v796 = vpop.f32.mrf.mxu0
        %v797 = vadd.f32 0.0, %v796
        %v798 = vpop.f32.mrf.mxu0
        %799 = vdwg.mxu0
        %v801 = vsel %vm630, %v713, 0
        %v804 = vsel %vm630, %v714, 0
        %806 = vmatprep.subr.mxu0 0.0
        %807 = vmatpush1.msra.mxu0 0.0
        %808 = vmatprep.subr.mxu0 0.0
        %809 = vmatpush1.msra.mxu0 0.0
        %810 = vmatprep.subr.mxu0 0.0
        %811 = vmatpush1.msra.mxu0 0.0
        %812 = vmatprep.subr.mxu0 0.0
        %813 = vmatpush1.msra.mxu0 0.0
        %814 = vmatprep.subr.mxu0 0.0
        %815 = vmatpush1.msra.mxu0 0.0
        %816 = vmatprep.subr.mxu0 0.0
        %817 = vmatpush1.msra.mxu0 0.0
        %818 = vmatprep.subr.mxu0 0.0
        %819 = vmatpush1.msra.mxu0 0.0
        %820 = vmatprep.subr.mxu0 0.0
        %821 = vmatpush1.msra.mxu0 0.0
        %822 = vmatprep.subr.mxu0 0.0
        %823 = vmatpush1.msra.mxu0 0.0
        %824 = vmatprep.subr.mxu0 0.0
        %825 = vmatpush1.msra.mxu0 0.0
        %826 = vmatprep.subr.mxu0 0.0
        %827 = vmatpush1.msra.mxu0 0.0
        %828 = vmatprep.subr.mxu0 0.0
        %829 = vmatpush1.msra.mxu0 0.0
        %830 = vmatprep.subr.mxu0 0.0
        %831 = vmatpush1.msra.mxu0 0.0
        %832 = vmatprep.subr.mxu0 0.0
        %833 = vmatpush1.msra.mxu0 0.0
        %834 = vmatprep.subr.mxu0 0.0
        %835 = vmatpush1.msra.mxu0 %v187
        %836 = vmatprep.subr.mxu0 0.0
        %837 = vmatpush1.msra.mxu0 %v186
        %838 = vmatprep.subr.mxu0 0.0
        %839 = vmatpush2.msra.mxu0 0.0
        %840 = vmatprep.subr.mxu0 0.0
        %841 = vmatpush2.msra.mxu0 0.0
        %842 = vmatprep.subr.mxu0 0.0
        %843 = vmatpush2.msra.mxu0 0.0
        %844 = vmatprep.subr.mxu0 0.0
        %845 = vmatpush2.msra.mxu0 0.0
        %846 = vmatprep.subr.mxu0 0.0
        %847 = vmatpush2.msra.mxu0 0.0
        %848 = vmatprep.subr.mxu0 0.0
        %849 = vmatpush2.msra.mxu0 0.0
        %850 = vmatprep.subr.mxu0 0.0
        %851 = vmatpush2.msra.mxu0 0.0
        %852 = vmatprep.subr.mxu0 0.0
        %853 = vmatpush2.msra.mxu0 0.0
        %854 = vmatprep.subr.mxu0 0.0
        %855 = vmatpush2.msra.mxu0 0.0
        %856 = vmatprep.subr.mxu0 0.0
        %857 = vmatpush2.msra.mxu0 0.0
        %858 = vmatprep.subr.mxu0 0.0
        %859 = vmatpush2.msra.mxu0 0.0
        %860 = vmatprep.subr.mxu0 0.0
        %861 = vmatpush2.msra.mxu0 0.0
        %862 = vmatprep.subr.mxu0 0.0
        %863 = vmatpush2.msra.mxu0 0.0
        %864 = vmatprep.subr.mxu0 0.0
        %865 = vmatpush2.msra.mxu0 0.0
        %866 = vmatprep.subr.mxu0 0.0
        %867 = vmatpush2.msra.mxu0 0.0
        %868 = vmatprep.subr.mxu0 0.0
        %869 = vmatpush2.msra.mxu0 0.0
        %870 = vmatprep.mubr.f32.mxu0 0.0
        %871 = vmatmul.mubr.f32.gmra.mxu0 %v801
        %v872 = vpop.f32.mrf.mxu0
        %v873 = vadd.f32 0.0, %v872
        %v874 = vpop.f32.mrf.mxu0
        %875 = vmatprep.mubr.f32.mxu0 0.0
        %876 = vmatmul.mubr.f32.gmra.mxu0 %v804
        %v877 = vpop.f32.mrf.mxu0
        %v878 = vadd.f32 0.0, %v877
        %v879 = vpop.f32.mrf.mxu0
        %880 = vdwg.mxu0
        %v882 = vsel %vm630, %v715, 0
        %v885 = vsel %vm630, %v716, 0
        %887 = vmatprep.subr.mxu0 0.0
        %888 = vmatpush1.msra.mxu0 0.0
        %889 = vmatprep.subr.mxu0 0.0
        %890 = vmatpush1.msra.mxu0 0.0
        %891 = vmatprep.subr.mxu0 0.0
        %892 = vmatpush1.msra.mxu0 0.0
        %893 = vmatprep.subr.mxu0 0.0
        %894 = vmatpush1.msra.mxu0 0.0
        %895 = vmatprep.subr.mxu0 0.0
        %896 = vmatpush1.msra.mxu0 0.0
        %897 = vmatprep.subr.mxu0 0.0
        %898 = vmatpush1.msra.mxu0 0.0
        %899 = vmatprep.subr.mxu0 0.0
        %900 = vmatpush1.msra.mxu0 0.0
        %901 = vmatprep.subr.mxu0 0.0
        %902 = vmatpush1.msra.mxu0 0.0
        %903 = vmatprep.subr.mxu0 0.0
        %904 = vmatpush1.msra.mxu0 0.0
        %905 = vmatprep.subr.mxu0 0.0
        %906 = vmatpush1.msra.mxu0 0.0
        %907 = vmatprep.subr.mxu0 0.0
        %908 = vmatpush1.msra.mxu0 0.0
        %909 = vmatprep.subr.mxu0 0.0
        %910 = vmatpush1.msra.mxu0 0.0
        %911 = vmatprep.subr.mxu0 0.0
        %912 = vmatpush1.msra.mxu0 0.0
        %913 = vmatprep.subr.mxu0 0.0
        %914 = vmatpush1.msra.mxu0 0.0
        %915 = vmatprep.subr.mxu0 0.0
        %916 = vmatpush1.msra.mxu0 %v189
        %917 = vmatprep.subr.mxu0 0.0
        %918 = vmatpush1.msra.mxu0 %v188
        %919 = vmatprep.subr.mxu0 0.0
        %920 = vmatpush2.msra.mxu0 0.0
        %921 = vmatprep.subr.mxu0 0.0
        %922 = vmatpush2.msra.mxu0 0.0
        %923 = vmatprep.subr.mxu0 0.0
        %924 = vmatpush2.msra.mxu0 0.0
        %925 = vmatprep.subr.mxu0 0.0
        %926 = vmatpush2.msra.mxu0 0.0
        %927 = vmatprep.subr.mxu0 0.0
        %928 = vmatpush2.msra.mxu0 0.0
        %929 = vmatprep.subr.mxu0 0.0
        %930 = vmatpush2.msra.mxu0 0.0
        %931 = vmatprep.subr.mxu0 0.0
        %932 = vmatpush2.msra.mxu0 0.0
        %933 = vmatprep.subr.mxu0 0.0
        %934 = vmatpush2.msra.mxu0 0.0
        %935 = vmatprep.subr.mxu0 0.0
        %936 = vmatpush2.msra.mxu0 0.0
        %937 = vmatprep.subr.mxu0 0.0
        %938 = vmatpush2.msra.mxu0 0.0
        %939 = vmatprep.subr.mxu0 0.0
        %940 = vmatpush2.msra.mxu0 0.0
        %941 = vmatprep.subr.mxu0 0.0
        %942 = vmatpush2.msra.mxu0 0.0
        %943 = vmatprep.subr.mxu0 0.0
        %944 = vmatpush2.msra.mxu0 0.0
        %945 = vmatprep.subr.mxu0 0.0
        %946 = vmatpush2.msra.mxu0 0.0
        %947 = vmatprep.subr.mxu0 0.0
        %948 = vmatpush2.msra.mxu0 0.0
        %949 = vmatprep.subr.mxu0 0.0
        %950 = vmatpush2.msra.mxu0 0.0
        %951 = vmatprep.mubr.f32.mxu0 0.0
        %952 = vmatmul.mubr.f32.gmra.mxu0 %v882
        %v953 = vpop.f32.mrf.mxu0
        %v954 = vadd.f32 0.0, %v953
        %v955 = vpop.f32.mrf.mxu0
        %956 = vmatprep.mubr.f32.mxu0 0.0
        %957 = vmatmul.mubr.f32.gmra.mxu0 %v885
        %v958 = vpop.f32.mrf.mxu0
        %v959 = vadd.f32 0.0, %v958
        %v960 = vpop.f32.mrf.mxu0
        %961 = vdwg.mxu0
        %v963 = vsel %vm630, %v717, 0
        %v966 = vsel %vm630, %v718, 0
        %968 = vmatprep.subr.mxu0 0.0
        %969 = vmatpush1.msra.mxu0 0.0
        %970 = vmatprep.subr.mxu0 0.0
        %971 = vmatpush1.msra.mxu0 0.0
        %972 = vmatprep.subr.mxu0 0.0
        %973 = vmatpush1.msra.mxu0 0.0
        %974 = vmatprep.subr.mxu0 0.0
        %975 = vmatpush1.msra.mxu0 0.0
        %976 = vmatprep.subr.mxu0 0.0
        %977 = vmatpush1.msra.mxu0 0.0
        %978 = vmatprep.subr.mxu0 0.0
        %979 = vmatpush1.msra.mxu0 0.0
        %980 = vmatprep.subr.mxu0 0.0
        %981 = vmatpush1.msra.mxu0 0.0
        %982 = vmatprep.subr.mxu0 0.0
        %983 = vmatpush1.msra.mxu0 0.0
        %984 = vmatprep.subr.mxu0 0.0
        %985 = vmatpush1.msra.mxu0 0.0
        %986 = vmatprep.subr.mxu0 0.0
        %987 = vmatpush1.msra.mxu0 0.0
        %988 = vmatprep.subr.mxu0 0.0
        %989 = vmatpush1.msra.mxu0 0.0
        %990 = vmatprep.subr.mxu0 0.0
        %991 = vmatpush1.msra.mxu0 0.0
        %992 = vmatprep.subr.mxu0 0.0
        %993 = vmatpush1.msra.mxu0 0.0
        %994 = vmatprep.subr.mxu0 0.0
        %995 = vmatpush1.msra.mxu0 0.0
        %996 = vmatprep.subr.mxu0 0.0
        %997 = vmatpush1.msra.mxu0 %v191
        %998 = vmatprep.subr.mxu0 0.0
        %999 = vmatpush1.msra.mxu0 %v190
        %1000 = vmatprep.subr.mxu0 0.0
        %1001 = vmatpush2.msra.mxu0 0.0
        %1002 = vmatprep.subr.mxu0 0.0
        %1003 = vmatpush2.msra.mxu0 0.0
        %1004 = vmatprep.subr.mxu0 0.0
        %1005 = vmatpush2.msra.mxu0 0.0
        %1006 = vmatprep.subr.mxu0 0.0
        %1007 = vmatpush2.msra.mxu0 0.0
        %1008 = vmatprep.subr.mxu0 0.0
        %1009 = vmatpush2.msra.mxu0 0.0
        %1010 = vmatprep.subr.mxu0 0.0
        %1011 = vmatpush2.msra.mxu0 0.0
        %1012 = vmatprep.subr.mxu0 0.0
        %1013 = vmatpush2.msra.mxu0 0.0
        %1014 = vmatprep.subr.mxu0 0.0
        %1015 = vmatpush2.msra.mxu0 0.0
        %1016 = vmatprep.subr.mxu0 0.0
        %1017 = vmatpush2.msra.mxu0 0.0
        %1018 = vmatprep.subr.mxu0 0.0
        %1019 = vmatpush2.msra.mxu0 0.0
        %1020 = vmatprep.subr.mxu0 0.0
        %1021 = vmatpush2.msra.mxu0 0.0
        %1022 = vmatprep.subr.mxu0 0.0
        %1023 = vmatpush2.msra.mxu0 0.0
        %1024 = vmatprep.subr.mxu0 0.0
        %1025 = vmatpush2.msra.mxu0 0.0
        %1026 = vmatprep.subr.mxu0 0.0
        %1027 = vmatpush2.msra.mxu0 0.0
        %1028 = vmatprep.subr.mxu0 0.0
        %1029 = vmatpush2.msra.mxu0 0.0
        %1030 = vmatprep.subr.mxu0 0.0
        %1031 = vmatpush2.msra.mxu0 0.0
        %1032 = vmatprep.mubr.f32.mxu0 0.0
        %1033 = vmatmul.mubr.f32.gmra.mxu0 %v963
        %v1034 = vpop.f32.mrf.mxu0
        %v1035 = vadd.f32 0.0, %v1034
        %v1036 = vpop.f32.mrf.mxu0
        %1037 = vmatprep.mubr.f32.mxu0 0.0
        %1038 = vmatmul.mubr.f32.gmra.mxu0 %v966
        %v1039 = vpop.f32.mrf.mxu0
        %v1040 = vadd.f32 0.0, %v1039
        %v1041 = vpop.f32.mrf.mxu0
        %1042 = vdwg.mxu0
        %1043 = vst [vmem:[%s179] sm:$0xff] %v792
        %1044 = vst [vmem:[%s179 + $0x8] sm:$0xff] %v797
        %1045 = vst [vmem:[%s179 + $0x10] sm:$0xff] %v873
        %1046 = vst [vmem:[%s179 + $0x18] sm:$0xff] %v878
        %1047 = vst [vmem:[%s179 + $0x20] sm:$0xff] %v954
        %1048 = vst [vmem:[%s179 + $0x28] sm:$0xff] %v959
        %1049 = vst [vmem:[%s179 + $0x30] sm:$0xff] %v1035
        %1050 = vst [vmem:[%s179 + $0x38] sm:$0xff] %v1040
        %s1051 = sand.u32 %s68, 1
        %s1052 = scalar_lea.sflag [#allocation4], %s1051
        %s1053 = sand.u32 %s68, 1
        %s1054 = smul.addr %s1053, 64
        %s1055 = scalar_lea.vmem [#allocation5], %s1054
        // Predicated region
        $region29: #{tpu_custom_call.1} parent=23 // pred_check
          %p1056 = pneg %p78
        $region30: #{tpu_custom_call.1} parent=23 // pred_check_branch
          %1058 = sbr.rel (%p1056) target = $region32
        $region31: #{tpu_custom_call.1} parent=23 // pred_region
          #allocation9 [shape = 'u32[6]{0}', space=smem, size = 0x18, scoped, tag = 'DMA stride descriptor']
          %s1059 = smul.u32 2, %s22
          %s1060 = smul.u32 2, %s23
          %s1062 = ssub.s32 1024, 1024
          %1063 = vsyncadd %s1052, %s1062
          %s1064 = smul.addr %s1060, 2
          %s1065 = smul.addr %s1059, 8
          %s1066 = sadd.s32 %s1064, %s1065
          %s1067 = smul.addr %s1066, 128
          %s1068 = scalar_lea.hbm %s1, %s1067
          %s1070 = sshll.u32 1, 14
          %s1071 = sxor.u32 4294967295, %s1070
          %s1074 = sshll.u32 7, 18
          %s1075 = sxor.u32 4294967295, %s1074
          %s1076 = sand.u32 0, %s1075
          %s1078 = sor.u32 %s1076, 0
          %s1079 = sshll.u32 %s1055, 4
          %s1080 = int_to_ptr.vmem [resolvable:$true] %s1079
          %1086 = sst [smem:[#allocation9]] 512
          %s1087 = scalar_lea.smem [#allocation9], 1
          %1088 = sst [smem:[%s1087]] 1024
          %s1089 = scalar_lea.smem [#allocation9], 2
          %1090 = sst [smem:[%s1089]] 4
          %s1091 = scalar_lea.smem [#allocation9], 3
          %1092 = sst [smem:[%s1091]] 128
          %s1093 = scalar_lea.smem [#allocation9], 4
          %1094 = sst [smem:[%s1093]] 128
          %s1095 = scalar_lea.smem [#allocation9], 5
          %1096 = sst [smem:[%s1095]] 8
          %1098 = dma.general %s1080, 1024, %s1068, %s1052, 131072, [#allocation9], %s1078, 0
        $region32: #{tpu_custom_call.1} parent=23 // pred_fallthru
          _
      $region24: #{tpu_custom_call.1} parent=5 // pred_fallthru
        _
      %p1099 = scmp.le.s32.totalorder 2, %s13
      // Predicated region
      $region33: #{tpu_custom_call.1} parent=5 // pred_check
        %p1100 = pneg %p1099
      $region34: #{tpu_custom_call.1} parent=5 // pred_check_branch
        %1102 = sbr.rel (%p1100) target = $region36
      $region35: #{tpu_custom_call.1} parent=5 // pred_region
        %s1103 = ssub.s32 %s13, 2
        // Predicated region
        $region37: #{tpu_custom_call.1} parent=35 // pred_check
          %p1104 = pneg %p84
        $region38: #{tpu_custom_call.1} parent=35 // pred_check_branch
          %1106 = sbr.rel (%p1104) target = $region40
        $region39: #{tpu_custom_call.1} parent=35 // pred_region
          %s1107 = sand.u32 %s69, 1
          %s1108 = scalar_lea.sflag [#allocation4], %s1107
          %s1109 = sand.u32 %s69, 1
          %s1110 = smul.addr %s1109, 64
          %s1111 = scalar_lea.vmem [#allocation5], %s1110
          %1112 = dma.done %s1108, 1024
        $region40: #{tpu_custom_call.1} parent=35 // pred_fallthru
          _
      $region36: #{tpu_custom_call.1} parent=5 // pred_fallthru
        _
    $region6: #{tpu_custom_call.1} parent=1 // loop_footer
      %s17 = sadd.s32 1, %s13
    $region7: #{tpu_custom_call.1} parent=1 // loop_footer_branch
      %12 = sbr.rel target = $region3
    $region8: #{tpu_custom_call.1} parent=1 // loop_exit
      _
    %1113 = vsyncpa [#allocation3], 1
    %s1114 = scalar_lea.sflag [#allocation3], 1
    %1115 = vsyncpa %s1114, 1
    %1116 = vsyncpa [#allocation4], 1
    %s1117 = scalar_lea.sflag [#allocation4], 1
    %1118 = vsyncpa %s1117, 1

</llo_original>
